<compile_context>
chip_gen: v5e
topology: v5e:2x2
jax: 0.10.0
libtpu: 0.0.40
codegen_flags: <defaults>
</compile_context>

<pallas_src>
import numpy as np
import jax
import jax.numpy as jnp
from jax import lax
from jax.experimental import pallas as pl
from jax.experimental.pallas import tpu as pltpu


def _round_up(x, m):
    return (x + m - 1) // m * m


def season_classifier_kernel(x_ref, w1_ref, b1_ref, w2_ref, b2_ref,
                             w3_ref, b3_ref, w3p_ref, b3p_ref, delta_ref, out_ref):
    # ---- SeasonEmbedder MLP: 512 -> 128 -> 32 (bf16 operands, f32 accumulation) ----
    x = x_ref[...]                                                               # (TB, 512) bf16
    h1 = jnp.maximum(
        jnp.dot(x, w1_ref[...], preferred_element_type=jnp.float32) + b1_ref[...], 0.0)  # (TB, 128)
    h2 = jnp.maximum(
        jnp.dot(h1.astype(jnp.bfloat16), w2_ref[...],
                preferred_element_type=jnp.float32) + b2_ref[...], 0.0)                   # (TB, 32)

    # ---- tail: two tiny MXU dots (no lane slices of a fused result) ----
    #   w   = h2 @ W3 + b3                       (TB, 2)   pre-scaling embedding
    #   num = h2 @ (W3 @ P^T/temp) + b3 @ (...)  (TB, C)   == w @ (P^T/temp)
    w = jnp.dot(h2, w3_ref[...], preferred_element_type=jnp.float32) + b3_ref[...]
    num = jnp.dot(h2, w3p_ref[...], preferred_element_type=jnp.float32) + b3p_ref[...]

    delta = delta_ref[0, 0]

    # scale s = 1 + delta/||w||  (NaN/Inf if ||w|| == 0, same as the PyTorch reference)
    sumsq = jnp.sum(w * w, axis=-1, keepdims=True)                               # (TB, 1)
    r = lax.rsqrt(sumsq)                                                         # one EUP transcendental
    w_norm = sumsq * r                                                           # ||w|| without a 2nd sqrt
    s = 1.0 + delta * r

    # CosineClassifier: anchors are unit-norm and ||w_scaled|| = |s| * ||w||, so
    #   logits = s * (w @ P^T / temp) / max(|s| * ||w||, 1e-6)
    # (abs keeps parity with torch.nn.CosineSimilarity even if delta trains negative).
    denom = jnp.maximum(jnp.abs(s) * w_norm, 1e-6)
    out_ref[...] = (num * s * pl.reciprocal(denom, approx=True)).astype(out_ref.dtype)


def season_classifier(x, params, *, block_b=4096):
    """x: (B, 512) float array (ideally already bf16). Returns (B, C) f32 logits."""
    B = x.shape[0]
    C = params["points_t"].shape[1]

    # Fold the (constant, tiny) class anchors and temperature into extra tail weights:
    #   W3p = W3 @ (P^T / temp)  (32, C),   b3p = b3 @ (P^T / temp)  (1, C)
    pts_scaled = params["points_t"] / params["temperature"][0, 0]                # (2, C)
    w3p = params["w3"] @ pts_scaled
    b3p = params["b3"] @ pts_scaled

    # bf16 for the HBM-dominant input stream and the two big matmul operands.
    x_bf16 = x.astype(jnp.bfloat16)
    w1 = params["w1"].astype(jnp.bfloat16)
    w2 = params["w2"].astype(jnp.bfloat16)

    # Tile size: guarantee >= ~4 grid steps when B permits (v7x megacore sharding +
    # double-buffering on each TC), cap at block_b (2-4 MiB bf16 x-tile amortizes the
    # ~0.35 us per-step overhead; cap at ~2048 for v5e deployments if desired).
    tb = min(block_b, max(8, -(-B // 4)))
    tb = _round_up(tb, 8)
    tb = min(tb, _round_up(B, 8))
    grid = (pl.cdiv(B, tb),)
    const = lambda i: (0, 0)

    flops = 2 * B * (512 * 128 + 128 * 32 + 32 * 2 + 32 * C)
    bytes_accessed = (B * 512 * 2 + B * C * 4              # x stream (bf16) + output (f32)
                      + 512 * 128 * 2 + 128 * 32 * 2       # W1, W2 (bf16)
                      + (128 + 32 + 2 + C + 32 * 2 + 32 * C + 1) * 4)  # biases, tail, delta
    cost = pl.CostEstimate(flops=flops, transcendentals=2 * B,
                           bytes_accessed=bytes_accessed)

    return pl.pallas_call(
        season_classifier_kernel,
        out_shape=jax.ShapeDtypeStruct((B, C), jnp.float32),
        grid=grid,
        in_specs=[
            pl.BlockSpec((tb, 512), lambda i: (i, 0)),          # x: batch-tiled, pipelined
            pl.BlockSpec((512, 128), const),                    # W1 (VMEM-resident)
            pl.BlockSpec((1, 128), const),                      # b1
            pl.BlockSpec((128, 32), const),                     # W2
            pl.BlockSpec((1, 32), const),                       # b2
            pl.BlockSpec((32, 2), const),                       # W3
            pl.BlockSpec((1, 2), const),                        # b3
            pl.BlockSpec((32, C), const),                       # W3 @ (P^T/temp)
            pl.BlockSpec((1, C), const),                        # b3 @ (P^T/temp)
            pl.BlockSpec(memory_space=pltpu.MemorySpace.SMEM),  # delta scalar
        ],
        out_specs=pl.BlockSpec((tb, C), lambda i: (i, 0)),      # lane-sparse output kept
        compiler_params=pltpu.CompilerParams(
            dimension_semantics=("parallel",),
            vmem_limit_bytes=32 * 1024 * 1024,
        ),
        cost_estimate=cost,
    )(x_bf16, w1, params["b1"], w2, params["b2"],
      params["w3"], params["b3"], w3p, b3p, params["delta"])


def init_params(key, n_classes=4):
    ks = jax.random.split(key, 8)

    def lin(kw, kb, d_in, d_out):
        lim = 1.0 / np.sqrt(d_in)
        w = jax.random.uniform(kw, (d_in, d_out), jnp.float32, -lim, lim)
        b = jax.random.uniform(kb, (1, d_out), jnp.float32, -lim, lim)
        return w, b

    w1, b1 = lin(ks[0], ks[1], 512, 128)
    w2, b2 = lin(ks[2], ks[3], 128, 32)
    w3, b3 = lin(ks[4], ks[5], 32, 2)
    delta = jax.random.uniform(ks[6], (1, 1), jnp.float32)         # nn.Parameter(torch.rand(1))
    temperature = jax.random.uniform(ks[7], (1, 1), jnp.float32)   # nn.Parameter(torch.rand(1))
    thetas = np.arange(0.0, 2 * np.pi, 2 * np.pi / n_classes)
    points = np.stack([np.cos(thetas), np.sin(thetas)], axis=1)    # (C, 2), unit rows
    points_t = jnp.asarray(points.T, dtype=jnp.float32)            # (2, C)
    return dict(w1=w1, b1=b1, w2=w2, b2=b2, w3=w3, b3=b3,
                delta=delta, temperature=temperature, points_t=points_t)


def reference(x_bf16, p):
    """Faithful to the PyTorch forward (same structure as SeasonClassifier.forward),
    using the same bf16 input/weight casts as the kernel (f32 accumulation)."""
    h1 = jnp.maximum(
        jnp.dot(x_bf16, p["w1"].astype(jnp.bfloat16),
                preferred_element_type=jnp.float32) + p["b1"], 0.0)
    h2 = jnp.maximum(
        jnp.dot(h1.astype(jnp.bfloat16), p["w2"].astype(jnp.bfloat16),
                preferred_element_type=jnp.float32) + p["b2"], 0.0)
    w = h2 @ p["w3"] + p["b3"]
    w_norm = jnp.linalg.norm(w, axis=-1, keepdims=True)
    w_scaled = w * (1.0 + p["delta"][0, 0] / w_norm)
    pts_t = p["points_t"]
    num = w_scaled @ pts_t
    denom = jnp.maximum(
        jnp.linalg.norm(w_scaled, axis=-1, keepdims=True)
        * jnp.linalg.norm(pts_t, axis=0, keepdims=True), 1e-6)
    return (num / denom) / p["temperature"][0, 0]


if __name__ == "__main__":
    key = jax.random.PRNGKey(0)
    k_params, k_x = jax.random.split(key)
    params = init_params(k_params, n_classes=4)

    B = 64
    x = jax.random.normal(k_x, (B, 512), dtype=jnp.float32)
    x_bf16 = x.astype(jnp.bfloat16)  # caller provides bf16 to halve the HBM stream

    logits = season_classifier(x_bf16, params)
    jax.block_until_ready(logits)

    ref = reference(x_bf16, params)
    np.testing.assert_allclose(np.asarray(logits), np.asarray(ref), rtol=5e-3, atol=5e-3)

    print("KERNEL_OK")
</pallas_src>

<mosaic_0001>
module attributes {stable_mosaic.version = 11 : i64} {
  func.func @season_classifier_kernel(%arg0: i32, %arg1: memref<16x512xbf16, #tpu.memory_space<vmem>>, %arg2: memref<512x128xbf16, #tpu.memory_space<vmem>>, %arg3: memref<1x128xf32, #tpu.memory_space<vmem>>, %arg4: memref<128x32xbf16, #tpu.memory_space<vmem>>, %arg5: memref<1x32xf32, #tpu.memory_space<vmem>>, %arg6: memref<32x2xf32, #tpu.memory_space<vmem>>, %arg7: memref<1x2xf32, #tpu.memory_space<vmem>>, %arg8: memref<32x4xf32, #tpu.memory_space<vmem>>, %arg9: memref<1x4xf32, #tpu.memory_space<vmem>>, %arg10: memref<1x1xf32, #tpu.memory_space<smem>>, %arg11: memref<16x4xf32, #tpu.memory_space<vmem>>) attributes {dimension_semantics = [#tpu.dimension_semantics<parallel>], iteration_bounds = array<i64: 4>, scalar_prefetch = 0 : i64, scratch_operands = 0 : i64, tpu.core_type = #tpu.core_type<tc>, window_params = [{transform_indices = @transform_0, window_bounds = array<i64: 16, 512>}, {pipeline_mode = #tpu.pipeline_mode<synchronous>, transform_indices = @transform_1, window_bounds = array<i64: 512, 128>}, {pipeline_mode = #tpu.pipeline_mode<synchronous>, transform_indices = @transform_2, window_bounds = array<i64: 1, 128>}, {pipeline_mode = #tpu.pipeline_mode<synchronous>, transform_indices = @transform_3, window_bounds = array<i64: 128, 32>}, {pipeline_mode = #tpu.pipeline_mode<synchronous>, transform_indices = @transform_4, window_bounds = array<i64: 1, 32>}, {pipeline_mode = #tpu.pipeline_mode<synchronous>, transform_indices = @transform_5, window_bounds = array<i64: 32, 2>}, {pipeline_mode = #tpu.pipeline_mode<synchronous>, transform_indices = @transform_6, window_bounds = array<i64: 1, 2>}, {pipeline_mode = #tpu.pipeline_mode<synchronous>, transform_indices = @transform_7, window_bounds = array<i64: 32, 4>}, {pipeline_mode = #tpu.pipeline_mode<synchronous>, transform_indices = @transform_8, window_bounds = array<i64: 1, 4>}, {transform_indices = @transform_9, window_bounds = array<i64: 1, 1>}, {transform_indices = @transform_10, window_bounds = array<i64: 16, 4>}]} {
    %c0 = arith.constant 0 : index
    %c0_0 = arith.constant 0 : index
    %0 = vector.load %arg1[%c0, %c0_0] : memref<16x512xbf16, #tpu.memory_space<vmem>>, vector<16x512xbf16>
    %c0_1 = arith.constant 0 : index
    %c0_2 = arith.constant 0 : index
    %1 = vector.load %arg2[%c0_1, %c0_2] : memref<512x128xbf16, #tpu.memory_space<vmem>>, vector<512x128xbf16>
    %cst = arith.constant dense<0.000000e+00> : vector<16x128xf32>
    %2 = tpu.matmul %0, %1, %cst {dimension_numbers = #tpu.dot_dimension_numbers<[1], [0], [0], [1], [0, 0, 1, 1], [], []>} : vector<16x512xbf16>, vector<512x128xbf16>, vector<16x128xf32> -> vector<16x128xf32>
    %c0_3 = arith.constant 0 : index
    %c0_4 = arith.constant 0 : index
    %3 = vector.load %arg3[%c0_3, %c0_4] : memref<1x128xf32, #tpu.memory_space<vmem>>, vector<1x128xf32>
    %4 = vector.broadcast %3 : vector<1x128xf32> to vector<16x128xf32>
    %5 = arith.addf %2, %4 : vector<16x128xf32>
    %cst_5 = arith.constant 0.000000e+00 : f32
    %6 = vector.broadcast %cst_5 : f32 to vector<16x128xf32>
    %7 = arith.maximumf %5, %6 : vector<16x128xf32>
    %8 = arith.truncf %7 : vector<16x128xf32> to vector<16x128xbf16>
    %c0_6 = arith.constant 0 : index
    %c0_7 = arith.constant 0 : index
    %9 = vector.load %arg4[%c0_6, %c0_7] : memref<128x32xbf16, #tpu.memory_space<vmem>>, vector<128x32xbf16>
    %cst_8 = arith.constant dense<0.000000e+00> : vector<16x32xf32>
    %10 = tpu.matmul %8, %9, %cst_8 {dimension_numbers = #tpu.dot_dimension_numbers<[1], [0], [0], [1], [0, 0, 1, 1], [], []>} : vector<16x128xbf16>, vector<128x32xbf16>, vector<16x32xf32> -> vector<16x32xf32>
    %c0_9 = arith.constant 0 : index
    %c0_10 = arith.constant 0 : index
    %11 = vector.load %arg5[%c0_9, %c0_10] : memref<1x32xf32, #tpu.memory_space<vmem>>, vector<1x32xf32>
    %12 = vector.broadcast %11 : vector<1x32xf32> to vector<16x32xf32>
    %13 = arith.addf %10, %12 : vector<16x32xf32>
    %cst_11 = arith.constant 0.000000e+00 : f32
    %14 = vector.broadcast %cst_11 : f32 to vector<16x32xf32>
    %15 = arith.maximumf %13, %14 : vector<16x32xf32>
    %c0_12 = arith.constant 0 : index
    %c0_13 = arith.constant 0 : index
    %16 = vector.load %arg6[%c0_12, %c0_13] : memref<32x2xf32, #tpu.memory_space<vmem>>, vector<32x2xf32>
    %cst_14 = arith.constant dense<0.000000e+00> : vector<16x2xf32>
    %17 = tpu.matmul %15, %16, %cst_14 {dimension_numbers = #tpu.dot_dimension_numbers<[1], [0], [0], [1], [0, 0, 1, 1], [], []>} : vector<16x32xf32>, vector<32x2xf32>, vector<16x2xf32> -> vector<16x2xf32>
    %c0_15 = arith.constant 0 : index
    %c0_16 = arith.constant 0 : index
    %18 = vector.load %arg7[%c0_15, %c0_16] : memref<1x2xf32, #tpu.memory_space<vmem>>, vector<1x2xf32>
    %19 = vector.broadcast %18 : vector<1x2xf32> to vector<16x2xf32>
    %20 = arith.addf %17, %19 : vector<16x2xf32>
    %c0_17 = arith.constant 0 : index
    %c0_18 = arith.constant 0 : index
    %21 = vector.load %arg8[%c0_17, %c0_18] : memref<32x4xf32, #tpu.memory_space<vmem>>, vector<32x4xf32>
    %cst_19 = arith.constant dense<0.000000e+00> : vector<16x4xf32>
    %22 = tpu.matmul %15, %21, %cst_19 {dimension_numbers = #tpu.dot_dimension_numbers<[1], [0], [0], [1], [0, 0, 1, 1], [], []>} : vector<16x32xf32>, vector<32x4xf32>, vector<16x4xf32> -> vector<16x4xf32>
    %c0_20 = arith.constant 0 : index
    %c0_21 = arith.constant 0 : index
    %23 = vector.load %arg9[%c0_20, %c0_21] : memref<1x4xf32, #tpu.memory_space<vmem>>, vector<1x4xf32>
    %24 = vector.broadcast %23 : vector<1x4xf32> to vector<16x4xf32>
    %25 = arith.addf %22, %24 : vector<16x4xf32>
    %c0_22 = arith.constant 0 : index
    %c0_23 = arith.constant 0 : index
    %26 = memref.load %arg10[%c0_22, %c0_23] : memref<1x1xf32, #tpu.memory_space<smem>>
    %27 = arith.mulf %20, %20 : vector<16x2xf32>
    %cst_24 = arith.constant dense<0.000000e+00> : vector<16xf32>
    %28 = vector.multi_reduction <add>, %27, %cst_24 [1] : vector<16x2xf32> to vector<16xf32>
    %29 = vector.shape_cast %28 : vector<16xf32> to vector<16x1xf32>
    %30 = math.rsqrt %29 : vector<16x1xf32>
    %31 = arith.mulf %29, %30 : vector<16x1xf32>
    %32 = vector.broadcast %26 : f32 to vector<16x1xf32>
    %33 = arith.mulf %32, %30 : vector<16x1xf32>
    %cst_25 = arith.constant 1.000000e+00 : f32
    %34 = vector.broadcast %cst_25 : f32 to vector<16x1xf32>
    %35 = arith.addf %34, %33 : vector<16x1xf32>
    %36 = math.absf %35 : vector<16x1xf32>
    %37 = arith.mulf %36, %31 : vector<16x1xf32>
    %cst_26 = arith.constant 9.99999997E-7 : f32
    %38 = vector.broadcast %cst_26 : f32 to vector<16x1xf32>
    %39 = arith.maximumf %37, %38 : vector<16x1xf32>
    %40 = vector.broadcast %35 : vector<16x1xf32> to vector<16x4xf32>
    %41 = arith.mulf %25, %40 : vector<16x4xf32>
    %42 = tpu.reciprocal %39 {approx = true} : vector<16x1xf32> -> vector<16x1xf32>
    %43 = vector.broadcast %42 : vector<16x1xf32> to vector<16x4xf32>
    %44 = arith.mulf %41, %43 : vector<16x4xf32>
    %c0_27 = arith.constant 0 : index
    %c0_28 = arith.constant 0 : index
    %45 = vector.load %arg11[%c0_27, %c0_28] : memref<16x4xf32, #tpu.memory_space<vmem>>, vector<16x4xf32>
    tpu.vector_store %arg11[%c0_27, %c0_28], %44 {strides = array<i32>} : memref<16x4xf32, #tpu.memory_space<vmem>>, vector<16x4xf32>,
    return
  }
  func.func @transform_0(%arg0: i32) -> (i32, i32) {
    %c0_i32 = arith.constant 0 : i32
    %c0_i32_0 = arith.constant 0 : i32
    return %arg0, %c0_i32 : i32, i32
  }
  func.func @transform_1(%arg0: i32) -> (i32, i32) {
    %c0_i32 = arith.constant 0 : i32
    %c0_i32_0 = arith.constant 0 : i32
    %c0_i32_1 = arith.constant 0 : i32
    return %c0_i32, %c0_i32_0 : i32, i32
  }
  func.func @transform_2(%arg0: i32) -> (i32, i32) {
    %c0_i32 = arith.constant 0 : i32
    %c0_i32_0 = arith.constant 0 : i32
    %c0_i32_1 = arith.constant 0 : i32
    return %c0_i32, %c0_i32_0 : i32, i32
  }
  func.func @transform_3(%arg0: i32) -> (i32, i32) {
    %c0_i32 = arith.constant 0 : i32
    %c0_i32_0 = arith.constant 0 : i32
    %c0_i32_1 = arith.constant 0 : i32
    return %c0_i32, %c0_i32_0 : i32, i32
  }
  func.func @transform_4(%arg0: i32) -> (i32, i32) {
    %c0_i32 = arith.constant 0 : i32
    %c0_i32_0 = arith.constant 0 : i32
    %c0_i32_1 = arith.constant 0 : i32
    return %c0_i32, %c0_i32_0 : i32, i32
  }
  func.func @transform_5(%arg0: i32) -> (i32, i32) {
    %c0_i32 = arith.constant 0 : i32
    %c0_i32_0 = arith.constant 0 : i32
    %c0_i32_1 = arith.constant 0 : i32
    return %c0_i32, %c0_i32_0 : i32, i32
  }
  func.func @transform_6(%arg0: i32) -> (i32, i32) {
    %c0_i32 = arith.constant 0 : i32
    %c0_i32_0 = arith.constant 0 : i32
    %c0_i32_1 = arith.constant 0 : i32
    return %c0_i32, %c0_i32_0 : i32, i32
  }
  func.func @transform_7(%arg0: i32) -> (i32, i32) {
    %c0_i32 = arith.constant 0 : i32
    %c0_i32_0 = arith.constant 0 : i32
    %c0_i32_1 = arith.constant 0 : i32
    return %c0_i32, %c0_i32_0 : i32, i32
  }
  func.func @transform_8(%arg0: i32) -> (i32, i32) {
    %c0_i32 = arith.constant 0 : i32
    %c0_i32_0 = arith.constant 0 : i32
    %c0_i32_1 = arith.constant 0 : i32
    return %c0_i32, %c0_i32_0 : i32, i32
  }
  func.func @transform_9(%arg0: i32) -> (i32, i32) {
    %c0_i32 = arith.constant 0 : i32
    %c0_i32_0 = arith.constant 0 : i32
    %c0_i32_1 = arith.constant 0 : i32
    return %c0_i32, %c0_i32_0 : i32, i32
  }
  func.func @transform_10(%arg0: i32) -> (i32, i32) {
    %c0_i32 = arith.constant 0 : i32
    %c0_i32_0 = arith.constant 0 : i32
    return %arg0, %c0_i32 : i32, i32
  }
}

</mosaic_0001>

<llo_original>
// kernel: tpu_custom_call.1
$region0: #{tpu_custom_call.1}
  #allocation0 [shape = 'u32[]', space=smem, size = 0x4, offset = 0x4, fixed_abs, tag = 'smem constant byte address 0x4 - core index']
  #allocation1 [shape = 'u32[72,128]{1,0:T(1,128)}', space=vmem, size = 0x9000, scoped, tag = 'internal scratch']
  #allocation2 [shape = 'f32[1,1]{1,0:T(1,128)S(6)}', space=smem, size = 0x200, scoped, tag = 'scoped memory for tpu_custom_call.1']
  %s0 = inlined_call_operand.vmem [shape: bf16[64,512], index: 0, kind: input, shape index: {}]
  %s1 = inlined_call_operand.hbm [shape: bf16[512,128], index: 1, kind: input, shape index: {}]
  %s2 = inlined_call_operand.vmem [shape: f32[1,128], index: 2, kind: input, shape index: {}]
  %s3 = inlined_call_operand.vmem [shape: bf16[128,32], index: 3, kind: input, shape index: {}]
  %s4 = inlined_call_operand.vmem [shape: f32[1,32], index: 4, kind: input, shape index: {}]
  %s5 = inlined_call_operand.vmem [shape: f32[32,2], index: 5, kind: input, shape index: {}]
  %s6 = inlined_call_operand.vmem [shape: f32[1,2], index: 6, kind: input, shape index: {}]
  %s7 = inlined_call_operand.vmem [shape: f32[32,4], index: 7, kind: input, shape index: {}]
  %s8 = inlined_call_operand.vmem [shape: f32[1,4], index: 8, kind: input, shape index: {}]
  %s9 = inlined_call_operand.<no memory space> [shape: f32[1,1], index: 9, kind: input, shape index: {}]
  %s10 = inlined_call_operand.vmem [shape: f32[64,4], index: 10, kind: output, shape index: {}]
  %s11 = sld [smem:[#allocation0]]
  $region77: #{tpu_custom_call.1} parent=0
    _
  %s13 = ssub.s32 1, %s11
  %s14 = scalar_select 0, %s13, %s11
  %15 = sst [smem:[#allocation2]] %s9
  $region1: #{tpu_custom_call.1} parent=0
    #allocation3 [shape = 'u8[131072]{0}', space=vmem, size = 0x20000, scoped, tag = 'input window, operand 1, single buffered']
    #allocation4 [shape = 's32[2]{0}', space=sflag, size = 0x8, scoped, tag = 'scoped memory for tpu_custom_call.1']
    %16 = vsyncpa [#allocation4], 0
    loop: start=0, step=1, limit=6
    $region2: #{tpu_custom_call.1} parent=1 // loop_pre_header
      _
    $region3: #{tpu_custom_call.1} parent=1 // loop_header
      %s18 = sphi 0, %s22
      %p19 = scmp.ge.s32.totalorder %s18, 6
      %s28 = sphi 0, %s30
      %s31 = sphi 0, %s28
      %s32 = sphi 0, %s31
      %s48 = sphi 0, %s32
      %s52 = sphi 0, %s52
      %s54 = sphi 0, %s52
      %s55 = sphi 0, %s54
      %s69 = sphi 0, %s55
      %s73 = sphi 0, %s73
      %s75 = sphi 0, %s73
      %s76 = sphi 0, %s75
      %s90 = sphi 0, %s76
      %s94 = sphi 0, %s94
      %s96 = sphi 0, %s94
      %s97 = sphi 0, %s96
      %s111 = sphi 0, %s97
      %s115 = sphi 0, %s115
      %s117 = sphi 0, %s115
      %s118 = sphi 0, %s117
      %s132 = sphi 0, %s118
      %s136 = sphi 0, %s136
      %s138 = sphi 0, %s136
      %s139 = sphi 0, %s138
      %s153 = sphi 0, %s139
      %s157 = sphi 0, %s157
      %s159 = sphi 0, %s157
      %s160 = sphi 0, %s159
      %s174 = sphi 0, %s160
      %s178 = sphi 0, %s178
      %s180 = sphi 0, %s178
      %s181 = sphi 0, %s180
      %s195 = sphi 0, %s181
      %s199 = sphi 0, %s199
      %s201 = sphi 0, %s199
      %s202 = sphi 0, %s201
      %s216 = sphi 0, %s202
      %s220 = sphi 0, %s220
      %s222 = sphi 0, %s220
      %s223 = sphi 0, %s222
      %s237 = sphi 0, %s223
      %s243 = sphi 0, %s245
      %s246 = sphi 0, %s243
      %s247 = sphi 0, %s246
      %s263 = sphi 0, %s247
    $region4: #{tpu_custom_call.1} parent=1 // loop_header_branch
      %21 = sbr.rel (%p19) target = $region8
    $region5: #{tpu_custom_call.1} parent=1 // loop_body
      %s23 = ssub.s32 %s18, 1
      %s24 = ssub.s32 %s18, 2
      %s25 = sadd.s32 %s18, 1
      %s26 = ssub.s32 %s18, %s25
      %p27 = scmp.eq.s32.totalorder %s26, 0
      %s29 = sadd.s32 %s28, 1
      %s30 = scalar_select %p27, %s28, %s29
      %p33 = pneg %p27
      %p34 = scmp.eq.s32.totalorder %s18, 3
      %p35 = por %p33, %p34
      %p36 = scmp.ne.s32.totalorder %s28, %s31
      %p37 = scmp.eq.s32.totalorder %s18, 0
      %p38 = por %p36, %p37
      %p39 = scmp.ne.s32.totalorder %s28, %s31
      %p40 = scmp.eq.s32.totalorder %s23, 3
      %p41 = por %p39, %p40
      %p42 = scmp.ne.s32.totalorder %s31, %s32
      %p43 = scmp.eq.s32.totalorder %s23, 0
      %p44 = por %p42, %p43
      %p45 = scmp.ne.s32.totalorder %s31, %s32
      %p46 = scmp.eq.s32.totalorder %s24, 3
      %p47 = por %p45, %p46
      %p49 = scmp.ne.s32.totalorder %s32, %s48
      %p50 = scmp.eq.s32.totalorder %s24, 0
      %p51 = por %p49, %p50
      %s53 = sadd.s32 %s52, 1
      %p56 = scmp.eq.s32.totalorder %s18, 3
      %p57 = scmp.ne.s32.totalorder %s52, %s54
      %p58 = scmp.eq.s32.totalorder %s18, 0
      %p59 = por %p57, %p58
      %p60 = scmp.ne.s32.totalorder %s52, %s54
      %p61 = scmp.eq.s32.totalorder %s23, 3
      %p62 = por %p60, %p61
      %p63 = scmp.ne.s32.totalorder %s54, %s55
      %p64 = scmp.eq.s32.totalorder %s23, 0
      %p65 = por %p63, %p64
      %p66 = scmp.ne.s32.totalorder %s54, %s55
      %p67 = scmp.eq.s32.totalorder %s24, 3
      %p68 = por %p66, %p67
      %p70 = scmp.ne.s32.totalorder %s55, %s69
      %p71 = scmp.eq.s32.totalorder %s24, 0
      %p72 = por %p70, %p71
      %s74 = sadd.s32 %s73, 1
      %p77 = scmp.eq.s32.totalorder %s18, 3
      %p78 = scmp.ne.s32.totalorder %s73, %s75
      %p79 = scmp.eq.s32.totalorder %s18, 0
      %p80 = por %p78, %p79
      %p81 = scmp.ne.s32.totalorder %s73, %s75
      %p82 = scmp.eq.s32.totalorder %s23, 3
      %p83 = por %p81, %p82
      %p84 = scmp.ne.s32.totalorder %s75, %s76
      %p85 = scmp.eq.s32.totalorder %s23, 0
      %p86 = por %p84, %p85
      %p87 = scmp.ne.s32.totalorder %s75, %s76
      %p88 = scmp.eq.s32.totalorder %s24, 3
      %p89 = por %p87, %p88
      %p91 = scmp.ne.s32.totalorder %s76, %s90
      %p92 = scmp.eq.s32.totalorder %s24, 0
      %p93 = por %p91, %p92
      %s95 = sadd.s32 %s94, 1
      %p98 = scmp.eq.s32.totalorder %s18, 3
      %p99 = scmp.ne.s32.totalorder %s94, %s96
      %p100 = scmp.eq.s32.totalorder %s18, 0
      %p101 = por %p99, %p100
      %p102 = scmp.ne.s32.totalorder %s94, %s96
      %p103 = scmp.eq.s32.totalorder %s23, 3
      %p104 = por %p102, %p103
      %p105 = scmp.ne.s32.totalorder %s96, %s97
      %p106 = scmp.eq.s32.totalorder %s23, 0
      %p107 = por %p105, %p106
      %p108 = scmp.ne.s32.totalorder %s96, %s97
      %p109 = scmp.eq.s32.totalorder %s24, 3
      %p110 = por %p108, %p109
      %p112 = scmp.ne.s32.totalorder %s97, %s111
      %p113 = scmp.eq.s32.totalorder %s24, 0
      %p114 = por %p112, %p113
      %s116 = sadd.s32 %s115, 1
      %p119 = scmp.eq.s32.totalorder %s18, 3
      %p120 = scmp.ne.s32.totalorder %s115, %s117
      %p121 = scmp.eq.s32.totalorder %s18, 0
      %p122 = por %p120, %p121
      %p123 = scmp.ne.s32.totalorder %s115, %s117
      %p124 = scmp.eq.s32.totalorder %s23, 3
      %p125 = por %p123, %p124
      %p126 = scmp.ne.s32.totalorder %s117, %s118
      %p127 = scmp.eq.s32.totalorder %s23, 0
      %p128 = por %p126, %p127
      %p129 = scmp.ne.s32.totalorder %s117, %s118
      %p130 = scmp.eq.s32.totalorder %s24, 3
      %p131 = por %p129, %p130
      %p133 = scmp.ne.s32.totalorder %s118, %s132
      %p134 = scmp.eq.s32.totalorder %s24, 0
      %p135 = por %p133, %p134
      %s137 = sadd.s32 %s136, 1
      %p140 = scmp.eq.s32.totalorder %s18, 3
      %p141 = scmp.ne.s32.totalorder %s136, %s138
      %p142 = scmp.eq.s32.totalorder %s18, 0
      %p143 = por %p141, %p142
      %p144 = scmp.ne.s32.totalorder %s136, %s138
      %p145 = scmp.eq.s32.totalorder %s23, 3
      %p146 = por %p144, %p145
      %p147 = scmp.ne.s32.totalorder %s138, %s139
      %p148 = scmp.eq.s32.totalorder %s23, 0
      %p149 = por %p147, %p148
      %p150 = scmp.ne.s32.totalorder %s138, %s139
      %p151 = scmp.eq.s32.totalorder %s24, 3
      %p152 = por %p150, %p151
      %p154 = scmp.ne.s32.totalorder %s139, %s153
      %p155 = scmp.eq.s32.totalorder %s24, 0
      %p156 = por %p154, %p155
      %s158 = sadd.s32 %s157, 1
      %p161 = scmp.eq.s32.totalorder %s18, 3
      %p162 = scmp.ne.s32.totalorder %s157, %s159
      %p163 = scmp.eq.s32.totalorder %s18, 0
      %p164 = por %p162, %p163
      %p165 = scmp.ne.s32.totalorder %s157, %s159
      %p166 = scmp.eq.s32.totalorder %s23, 3
      %p167 = por %p165, %p166
      %p168 = scmp.ne.s32.totalorder %s159, %s160
      %p169 = scmp.eq.s32.totalorder %s23, 0
      %p170 = por %p168, %p169
      %p171 = scmp.ne.s32.totalorder %s159, %s160
      %p172 = scmp.eq.s32.totalorder %s24, 3
      %p173 = por %p171, %p172
      %p175 = scmp.ne.s32.totalorder %s160, %s174
      %p176 = scmp.eq.s32.totalorder %s24, 0
      %p177 = por %p175, %p176
      %s179 = sadd.s32 %s178, 1
      %p182 = scmp.eq.s32.totalorder %s18, 3
      %p183 = scmp.ne.s32.totalorder %s178, %s180
      %p184 = scmp.eq.s32.totalorder %s18, 0
      %p185 = por %p183, %p184
      %p186 = scmp.ne.s32.totalorder %s178, %s180
      %p187 = scmp.eq.s32.totalorder %s23, 3
      %p188 = por %p186, %p187
      %p189 = scmp.ne.s32.totalorder %s180, %s181
      %p190 = scmp.eq.s32.totalorder %s23, 0
      %p191 = por %p189, %p190
      %p192 = scmp.ne.s32.totalorder %s180, %s181
      %p193 = scmp.eq.s32.totalorder %s24, 3
      %p194 = por %p192, %p193
      %p196 = scmp.ne.s32.totalorder %s181, %s195
      %p197 = scmp.eq.s32.totalorder %s24, 0
      %p198 = por %p196, %p197
      %s200 = sadd.s32 %s199, 1
      %p203 = scmp.eq.s32.totalorder %s18, 3
      %p204 = scmp.ne.s32.totalorder %s199, %s201
      %p205 = scmp.eq.s32.totalorder %s18, 0
      %p206 = por %p204, %p205
      %p207 = scmp.ne.s32.totalorder %s199, %s201
      %p208 = scmp.eq.s32.totalorder %s23, 3
      %p209 = por %p207, %p208
      %p210 = scmp.ne.s32.totalorder %s201, %s202
      %p211 = scmp.eq.s32.totalorder %s23, 0
      %p212 = por %p210, %p211
      %p213 = scmp.ne.s32.totalorder %s201, %s202
      %p214 = scmp.eq.s32.totalorder %s24, 3
      %p215 = por %p213, %p214
      %p217 = scmp.ne.s32.totalorder %s202, %s216
      %p218 = scmp.eq.s32.totalorder %s24, 0
      %p219 = por %p217, %p218
      %s221 = sadd.s32 %s220, 1
      %p224 = scmp.eq.s32.totalorder %s18, 3
      %p225 = scmp.ne.s32.totalorder %s220, %s222
      %p226 = scmp.eq.s32.totalorder %s18, 0
      %p227 = por %p225, %p226
      %p228 = scmp.ne.s32.totalorder %s220, %s222
      %p229 = scmp.eq.s32.totalorder %s23, 3
      %p230 = por %p228, %p229
      %p231 = scmp.ne.s32.totalorder %s222, %s223
      %p232 = scmp.eq.s32.totalorder %s23, 0
      %p233 = por %p231, %p232
      %p234 = scmp.ne.s32.totalorder %s222, %s223
      %p235 = scmp.eq.s32.totalorder %s24, 3
      %p236 = por %p234, %p235
      %p238 = scmp.ne.s32.totalorder %s223, %s237
      %p239 = scmp.eq.s32.totalorder %s24, 0
      %p240 = por %p238, %p239
      %s241 = ssub.s32 %s18, %s25
      %p242 = scmp.eq.s32.totalorder %s241, 0
      %s244 = sadd.s32 %s243, 1
      %s245 = scalar_select %p242, %s243, %s244
      %p248 = pneg %p242
      %p249 = scmp.eq.s32.totalorder %s18, 3
      %p250 = por %p248, %p249
      %p251 = scmp.ne.s32.totalorder %s243, %s246
      %p252 = scmp.eq.s32.totalorder %s18, 0
      %p253 = por %p251, %p252
      %p254 = scmp.ne.s32.totalorder %s243, %s246
      %p255 = scmp.eq.s32.totalorder %s23, 3
      %p256 = por %p254, %p255
      %p257 = scmp.ne.s32.totalorder %s246, %s247
      %p258 = scmp.eq.s32.totalorder %s23, 0
      %p259 = por %p257, %p258
      %p260 = scmp.ne.s32.totalorder %s246, %s247
      %p261 = scmp.eq.s32.totalorder %s24, 3
      %p262 = por %p260, %p261
      %p264 = scmp.ne.s32.totalorder %s247, %s263
      %p265 = scmp.eq.s32.totalorder %s24, 0
      %p266 = por %p264, %p265
      %p267 = scmp.le.s32.totalorder 1, %s18
      %p268 = scmp.lt.s32.totalorder %s18, 5
      %p269 = pnand %p267, %p268
      %p270 = pneg %p269
      // Predicated region
      $region9: #{tpu_custom_call.1} parent=5 // pred_check
        _
      $region10: #{tpu_custom_call.1} parent=5 // pred_check_branch
        %272 = sbr.rel (%p269) target = $region12
      $region11: #{tpu_custom_call.1} parent=5 // pred_region
        %s273 = ssub.s32 %s18, 1
        // Predicated region
        $region13: #{tpu_custom_call.1} parent=11 // pred_check
          %p274 = pneg %p65
        $region14: #{tpu_custom_call.1} parent=11 // pred_check_branch
          %276 = sbr.rel (%p274) target = $region16
        $region15: #{tpu_custom_call.1} parent=11 // pred_region
          %278 = vsyncadd [#allocation4], 0
          %s279 = sshll.u32 %s1, 4
          %s280 = int_to_ptr.hbm [resolvable:$true] %s279
          %s281 = sshll.u32 [#allocation3], 4
          %s282 = int_to_ptr.vmem [resolvable:$true] %s281
          %287 = dma.hbm_to_vmem [thread:$0]  %s280, 4096, %s282, [#allocation4], 64, 64, 4
        $region16: #{tpu_custom_call.1} parent=11 // pred_fallthru
          _
        // Predicated region
        $region17: #{tpu_custom_call.1} parent=11 // pred_check
          %p288 = pneg %p86
        $region18: #{tpu_custom_call.1} parent=11 // pred_check_branch
          %290 = sbr.rel (%p288) target = $region20
        $region19: #{tpu_custom_call.1} parent=11 // pred_region
          _
        $region20: #{tpu_custom_call.1} parent=11 // pred_fallthru
          _
        // Predicated region
        $region21: #{tpu_custom_call.1} parent=11 // pred_check
          %p291 = pneg %p107
        $region22: #{tpu_custom_call.1} parent=11 // pred_check_branch
          %293 = sbr.rel (%p291) target = $region24
        $region23: #{tpu_custom_call.1} parent=11 // pred_region
          _
        $region24: #{tpu_custom_call.1} parent=11 // pred_fallthru
          _
        // Predicated region
        $region25: #{tpu_custom_call.1} parent=11 // pred_check
          %p294 = pneg %p128
        $region26: #{tpu_custom_call.1} parent=11 // pred_check_branch
          %296 = sbr.rel (%p294) target = $region28
        $region27: #{tpu_custom_call.1} parent=11 // pred_region
          _
        $region28: #{tpu_custom_call.1} parent=11 // pred_fallthru
          _
        // Predicated region
        $region29: #{tpu_custom_call.1} parent=11 // pred_check
          %p297 = pneg %p149
        $region30: #{tpu_custom_call.1} parent=11 // pred_check_branch
          %299 = sbr.rel (%p297) target = $region32
        $region31: #{tpu_custom_call.1} parent=11 // pred_region
          _
        $region32: #{tpu_custom_call.1} parent=11 // pred_fallthru
          _
        // Predicated region
        $region33: #{tpu_custom_call.1} parent=11 // pred_check
          %p300 = pneg %p170
        $region34: #{tpu_custom_call.1} parent=11 // pred_check_branch
          %302 = sbr.rel (%p300) target = $region36
        $region35: #{tpu_custom_call.1} parent=11 // pred_region
          _
        $region36: #{tpu_custom_call.1} parent=11 // pred_fallthru
          _
        // Predicated region
        $region37: #{tpu_custom_call.1} parent=11 // pred_check
          %p303 = pneg %p191
        $region38: #{tpu_custom_call.1} parent=11 // pred_check_branch
          %305 = sbr.rel (%p303) target = $region40
        $region39: #{tpu_custom_call.1} parent=11 // pred_region
          _
        $region40: #{tpu_custom_call.1} parent=11 // pred_fallthru
          _
        // Predicated region
        $region41: #{tpu_custom_call.1} parent=11 // pred_check
          %p306 = pneg %p212
        $region42: #{tpu_custom_call.1} parent=11 // pred_check_branch
          %308 = sbr.rel (%p306) target = $region44
        $region43: #{tpu_custom_call.1} parent=11 // pred_region
          _
        $region44: #{tpu_custom_call.1} parent=11 // pred_fallthru
          _
        // Predicated region
        $region45: #{tpu_custom_call.1} parent=11 // pred_check
          %p309 = pneg %p233
        $region46: #{tpu_custom_call.1} parent=11 // pred_check_branch
          %311 = sbr.rel (%p309) target = $region48
        $region47: #{tpu_custom_call.1} parent=11 // pred_region
          _
        $region48: #{tpu_custom_call.1} parent=11 // pred_fallthru
          _
      $region12: #{tpu_custom_call.1} parent=5 // pred_fallthru
        _
      %p312 = scmp.lt.s32.totalorder %s18, 4
      // Predicated region
      $region49: #{tpu_custom_call.1} parent=5 // pred_check
        %p313 = pneg %p312
      $region50: #{tpu_custom_call.1} parent=5 // pred_check_branch
        %315 = sbr.rel (%p313) target = $region52
      $region51: #{tpu_custom_call.1} parent=5 // pred_region
        // Predicated region
        $region53: #{tpu_custom_call.1} parent=51 // pred_check
          %p316 = pneg %p38
        $region54: #{tpu_custom_call.1} parent=51 // pred_check_branch
          %318 = sbr.rel (%p316) target = $region56
        $region55: #{tpu_custom_call.1} parent=51 // pred_region
          %s319 = smul.u32 2, %s18
          %p320 = scmp.lt.s32.totalorder %s319, 7
          %s321 = scalar_select %p320, %s319, 7
          %s322 = smul.addr %s321, 4
          %s323 = smul.addr %s322, 4
          %s324 = scalar_lea.vmem %s0, %s323
          %s325 = smul.u32 2, %s18
        $region56: #{tpu_custom_call.1} parent=51 // pred_fallthru
          _
      $region52: #{tpu_custom_call.1} parent=5 // pred_fallthru
        _
      %p326 = scmp.le.s32.totalorder 1, %s18
      %p327 = scmp.lt.s32.totalorder %s18, 5
      %p328 = pnand %p326, %p327
      %p329 = pneg %p328
      // Predicated region
      $region57: #{tpu_custom_call.1} parent=5 // pred_check
        _
      $region58: #{tpu_custom_call.1} parent=5 // pred_check_branch
        %331 = sbr.rel (%p328) target = $region60
      $region59: #{tpu_custom_call.1} parent=5 // pred_region
        %s332 = ssub.s32 %s18, 1
        // Predicated region
        $region61: #{tpu_custom_call.1} parent=59 // pred_check
          %p333 = pneg %p65
        $region62: #{tpu_custom_call.1} parent=59 // pred_check_branch
          %335 = sbr.rel (%p333) target = $region64
        $region63: #{tpu_custom_call.1} parent=59 // pred_region
          %337 = dma.done [#allocation4], 4096
        $region64: #{tpu_custom_call.1} parent=59 // pred_fallthru
          _
        %s338 = smul.u32 2, %s23
        %p339 = scmp.lt.s32.totalorder %s338, 7
        %s340 = scalar_select %p339, %s338, 7
        %s341 = smul.addr %s340, 4
        %s342 = smul.addr %s341, 4
        %s343 = scalar_lea.vmem %s0, %s342
        %p344 = pneg %p44
        %p345 = pneg %p41
        %p346 = pneg %p65
        %p347 = pneg %p62
        %p348 = pneg %p86
        %p349 = pneg %p83
        %p350 = pneg %p107
        %p351 = pneg %p104
        %p352 = pneg %p128
        %p353 = pneg %p125
        %p354 = pneg %p149
        %p355 = pneg %p146
        %p356 = pneg %p170
        %p357 = pneg %p167
        %p358 = pneg %p191
        %p359 = pneg %p188
        %p360 = pneg %p212
        %p361 = pneg %p209
        %p362 = pneg %p233
        %p363 = pneg %p230
        %p364 = pneg %p259
        %p365 = pneg %p256
        %s366 = smul.u32 2, %s23
        %p367 = scmp.lt.s32.totalorder %s366, 7
        %s368 = scalar_select %p367, %s366, 7
        %s369 = smul.addr %s368, 8
        %s370 = scalar_lea.vmem %s10, %s369
        %s371 = smul.u32 2, %s23
        %p372 = scmp.lt.s32.totalorder %s371, 7
        %s373 = scalar_select %p372, %s371, 7
        %s374 = smul.addr %s373, 4
        %s375 = smul.addr %s374, 4
        %s376 = scalar_lea.vmem %s0, %s375
        %s377 = smul.u32 2, %s23
        %s378 = smul.u32 2, %s23
        %p379 = scmp.lt.s32.totalorder %s378, 7
        %s380 = scalar_select %p379, %s378, 7
        %s381 = smul.addr %s380, 8
        %s382 = scalar_lea.vmem %s10, %s381
        %s383 = smul.u32 2, %s23
        %v384 = vld [vmem:[%s376] sm:$0xff]
        %v385 = vld [vmem:[%s376 + $0x8] sm:$0xff]
        %v386 = vld [vmem:[%s376 + $0x10] sm:$0xff]
        %v387 = vld [vmem:[%s376 + $0x18] sm:$0xff]
        %v388 = vld [vmem:[#allocation3] sm:$0xf]
        %v389 = vld [vmem:[#allocation3 + $0x4] sm:$0xf]
        %v390 = vld [vmem:[#allocation3 + $0x8] sm:$0xf]
        %v391 = vld [vmem:[#allocation3 + $0xc] sm:$0xf]
        %v392 = vld [vmem:[#allocation3 + $0x10] sm:$0xf]
        %v393 = vld [vmem:[#allocation3 + $0x14] sm:$0xf]
        %v394 = vld [vmem:[#allocation3 + $0x18] sm:$0xf]
        %v395 = vld [vmem:[#allocation3 + $0x1c] sm:$0xf]
        %v396 = vld [vmem:[#allocation3 + $0x20] sm:$0xf]
        %v397 = vld [vmem:[#allocation3 + $0x24] sm:$0xf]
        %v398 = vld [vmem:[#allocation3 + $0x28] sm:$0xf]
        %v399 = vld [vmem:[#allocation3 + $0x2c] sm:$0xf]
        %v400 = vld [vmem:[#allocation3 + $0x30] sm:$0xf]
        %v401 = vld [vmem:[#allocation3 + $0x34] sm:$0xf]
        %v402 = vld [vmem:[#allocation3 + $0x38] sm:$0xf]
        %v403 = vld [vmem:[#allocation3 + $0x3c] sm:$0xf]
        %v404 = vld [vmem:[#allocation3 + $0x40] sm:$0xf]
        %v405 = vld [vmem:[#allocation3 + $0x44] sm:$0xf]
        %v406 = vld [vmem:[#allocation3 + $0x48] sm:$0xf]
        %v407 = vld [vmem:[#allocation3 + $0x4c] sm:$0xf]
        %v408 = vld [vmem:[#allocation3 + $0x50] sm:$0xf]
        %v409 = vld [vmem:[#allocation3 + $0x54] sm:$0xf]
        %v410 = vld [vmem:[#allocation3 + $0x58] sm:$0xf]
        %v411 = vld [vmem:[#allocation3 + $0x5c] sm:$0xf]
        %v412 = vld [vmem:[#allocation3 + $0x60] sm:$0xf]
        %v413 = vld [vmem:[#allocation3 + $0x64] sm:$0xf]
        %v414 = vld [vmem:[#allocation3 + $0x68] sm:$0xf]
        %v415 = vld [vmem:[#allocation3 + $0x6c] sm:$0xf]
        %v416 = vld [vmem:[#allocation3 + $0x70] sm:$0xf]
        %v417 = vld [vmem:[#allocation3 + $0x74] sm:$0xf]
        %v418 = vld [vmem:[#allocation3 + $0x78] sm:$0xf]
        %v419 = vld [vmem:[#allocation3 + $0x7c] sm:$0xf]
        %v420 = vld [vmem:[#allocation3 + $0x80] sm:$0xf]
        %v421 = vld [vmem:[#allocation3 + $0x84] sm:$0xf]
        %v422 = vld [vmem:[#allocation3 + $0x88] sm:$0xf]
        %v423 = vld [vmem:[#allocation3 + $0x8c] sm:$0xf]
        %v424 = vld [vmem:[#allocation3 + $0x90] sm:$0xf]
        %v425 = vld [vmem:[#allocation3 + $0x94] sm:$0xf]
        %v426 = vld [vmem:[#allocation3 + $0x98] sm:$0xf]
        %v427 = vld [vmem:[#allocation3 + $0x9c] sm:$0xf]
        %v428 = vld [vmem:[#allocation3 + $0xa0] sm:$0xf]
        %v429 = vld [vmem:[#allocation3 + $0xa4] sm:$0xf]
        %v430 = vld [vmem:[#allocation3 + $0xa8] sm:$0xf]
        %v431 = vld [vmem:[#allocation3 + $0xac] sm:$0xf]
        %v432 = vld [vmem:[#allocation3 + $0xb0] sm:$0xf]
        %v433 = vld [vmem:[#allocation3 + $0xb4] sm:$0xf]
        %v434 = vld [vmem:[#allocation3 + $0xb8] sm:$0xf]
        %v435 = vld [vmem:[#allocation3 + $0xbc] sm:$0xf]
        %v436 = vld [vmem:[#allocation3 + $0xc0] sm:$0xf]
        %v437 = vld [vmem:[#allocation3 + $0xc4] sm:$0xf]
        %v438 = vld [vmem:[#allocation3 + $0xc8] sm:$0xf]
        %v439 = vld [vmem:[#allocation3 + $0xcc] sm:$0xf]
        %v440 = vld [vmem:[#allocation3 + $0xd0] sm:$0xf]
        %v441 = vld [vmem:[#allocation3 + $0xd4] sm:$0xf]
        %v442 = vld [vmem:[#allocation3 + $0xd8] sm:$0xf]
        %v443 = vld [vmem:[#allocation3 + $0xdc] sm:$0xf]
        %v444 = vld [vmem:[#allocation3 + $0xe0] sm:$0xf]
        %v445 = vld [vmem:[#allocation3 + $0xe4] sm:$0xf]
        %v446 = vld [vmem:[#allocation3 + $0xe8] sm:$0xf]
        %v447 = vld [vmem:[#allocation3 + $0xec] sm:$0xf]
        %v448 = vld [vmem:[#allocation3 + $0xf0] sm:$0xf]
        %v449 = vld [vmem:[#allocation3 + $0xf4] sm:$0xf]
        %v450 = vld [vmem:[#allocation3 + $0xf8] sm:$0xf]
        %v451 = vld [vmem:[#allocation3 + $0xfc] sm:$0xf]
        %v452 = vld [vmem:[%s2] sm:$0x1]
        %v454 = vperm.slane %v452, 0
        %v460 = vunpack.c.l.b16 %v384
        %v461 = vunpack.c.h.b16 %v384
        %v462 = vunpack.c.l.b16 %v385
        %v463 = vunpack.c.h.b16 %v385
        %v464 = vunpack.c.l.b16 %v386
        %v465 = vunpack.c.h.b16 %v386
        %v466 = vunpack.c.l.b16 %v387
        %v467 = vunpack.c.h.b16 %v387
        %v468 = vpack.c.b16 %v464, %v460
        %v469 = vpack.c.b16 %v465, %v461
        %v470 = vpack.c.b16 %v466, %v462
        %v471 = vpack.c.b16 %v467, %v463
        %v540 = vunpack.c.l.b16 %v388
        %v541 = vunpack.c.l.b16 %v389
        %v542 = vunpack.c.l.b16 %v390
        %v543 = vunpack.c.l.b16 %v391
        %v544 = vunpack.c.l.b16 %v392
        %v545 = vunpack.c.l.b16 %v393
        %v546 = vunpack.c.l.b16 %v394
        %v547 = vunpack.c.l.b16 %v395
        %v548 = vunpack.c.l.b16 %v396
        %v549 = vunpack.c.l.b16 %v397
        %v550 = vunpack.c.l.b16 %v398
        %v551 = vunpack.c.l.b16 %v399
        %v552 = vunpack.c.l.b16 %v400
        %v553 = vunpack.c.l.b16 %v401
        %v554 = vunpack.c.l.b16 %v402
        %v555 = vunpack.c.l.b16 %v403
        %v556 = vunpack.c.l.b16 %v404
        %v557 = vunpack.c.l.b16 %v405
        %v558 = vunpack.c.l.b16 %v406
        %v559 = vunpack.c.l.b16 %v407
        %v560 = vunpack.c.l.b16 %v408
        %v561 = vunpack.c.l.b16 %v409
        %v562 = vunpack.c.l.b16 %v410
        %v563 = vunpack.c.l.b16 %v411
        %v564 = vunpack.c.l.b16 %v412
        %v565 = vunpack.c.l.b16 %v413
        %v566 = vunpack.c.l.b16 %v414
        %v567 = vunpack.c.l.b16 %v415
        %v568 = vunpack.c.l.b16 %v416
        %v569 = vunpack.c.l.b16 %v417
        %v570 = vunpack.c.l.b16 %v418
        %v571 = vunpack.c.l.b16 %v419
        %v572 = vunpack.c.l.b16 %v420
        %v573 = vunpack.c.l.b16 %v421
        %v574 = vunpack.c.l.b16 %v422
        %v575 = vunpack.c.l.b16 %v423
        %v576 = vunpack.c.l.b16 %v424
        %v577 = vunpack.c.l.b16 %v425
        %v578 = vunpack.c.l.b16 %v426
        %v579 = vunpack.c.l.b16 %v427
        %v580 = vunpack.c.l.b16 %v428
        %v581 = vunpack.c.l.b16 %v429
        %v582 = vunpack.c.l.b16 %v430
        %v583 = vunpack.c.l.b16 %v431
        %v584 = vunpack.c.l.b16 %v432
        %v585 = vunpack.c.l.b16 %v433
        %v586 = vunpack.c.l.b16 %v434
        %v587 = vunpack.c.l.b16 %v435
        %v588 = vunpack.c.l.b16 %v436
        %v589 = vunpack.c.l.b16 %v437
        %v590 = vunpack.c.l.b16 %v438
        %v591 = vunpack.c.l.b16 %v439
        %v592 = vunpack.c.l.b16 %v440
        %v593 = vunpack.c.l.b16 %v441
        %v594 = vunpack.c.l.b16 %v442
        %v595 = vunpack.c.l.b16 %v443
        %v596 = vunpack.c.l.b16 %v444
        %v597 = vunpack.c.l.b16 %v445
        %v598 = vunpack.c.l.b16 %v446
        %v599 = vunpack.c.l.b16 %v447
        %v600 = vunpack.c.l.b16 %v448
        %v601 = vunpack.c.l.b16 %v449
        %v602 = vunpack.c.l.b16 %v450
        %v603 = vunpack.c.l.b16 %v451
        %v604 = vpack.c.b16 %v541, %v540
        %v605 = vpack.c.b16 %v543, %v542
        %v606 = vpack.c.b16 %v545, %v544
        %v607 = vpack.c.b16 %v547, %v546
        %v608 = vpack.c.b16 %v549, %v548
        %v609 = vpack.c.b16 %v551, %v550
        %v610 = vpack.c.b16 %v553, %v552
        %v611 = vpack.c.b16 %v555, %v554
        %v612 = vpack.c.b16 %v557, %v556
        %v613 = vpack.c.b16 %v559, %v558
        %v614 = vpack.c.b16 %v561, %v560
        %v615 = vpack.c.b16 %v563, %v562
        %v616 = vpack.c.b16 %v565, %v564
        %v617 = vpack.c.b16 %v567, %v566
        %v618 = vpack.c.b16 %v569, %v568
        %v619 = vpack.c.b16 %v571, %v570
        %v620 = vpack.c.b16 %v573, %v572
        %v621 = vpack.c.b16 %v575, %v574
        %v622 = vpack.c.b16 %v577, %v576
        %v623 = vpack.c.b16 %v579, %v578
        %v624 = vpack.c.b16 %v581, %v580
        %v625 = vpack.c.b16 %v583, %v582
        %v626 = vpack.c.b16 %v585, %v584
        %v627 = vpack.c.b16 %v587, %v586
        %v628 = vpack.c.b16 %v589, %v588
        %v629 = vpack.c.b16 %v591, %v590
        %v630 = vpack.c.b16 %v593, %v592
        %v631 = vpack.c.b16 %v595, %v594
        %v632 = vpack.c.b16 %v597, %v596
        %v633 = vpack.c.b16 %v599, %v598
        %v634 = vpack.c.b16 %v601, %v600
        %v635 = vpack.c.b16 %v603, %v602
        %668 = vmatpush.bf16.msra.mxu0 %v611
        %669 = vmatpush.bf16.msra.mxu0 %v610
        %670 = vmatpush.bf16.msra.mxu0 %v609
        %671 = vmatpush.bf16.msra.mxu0 %v608
        %672 = vmatpush.bf16.msra.mxu0 %v607
        %673 = vmatpush.bf16.msra.mxu0 %v606
        %674 = vmatpush.bf16.msra.mxu0 %v605
        %675 = vmatpush.bf16.msra.mxu0 %v604
        %676 = vmatmul.bf16.gmra.mxu0 %v468
        %v677 = vpop.f32.mrf.mxu0
        %v678 = vadd.f32 %v454, %v677
        %v679 = vpop.f32.mrf.mxu0
        %v680 = vadd.f32 %v454, %v679
        %681 = vdwg.mxu0
        %682 = vmatpush.bf16.msra.mxu0 %v619
        %683 = vmatpush.bf16.msra.mxu0 %v618
        %684 = vmatpush.bf16.msra.mxu0 %v617
        %685 = vmatpush.bf16.msra.mxu0 %v616
        %686 = vmatpush.bf16.msra.mxu0 %v615
        %687 = vmatpush.bf16.msra.mxu0 %v614
        %688 = vmatpush.bf16.msra.mxu0 %v613
        %689 = vmatpush.bf16.msra.mxu0 %v612
        %690 = vmatmul.bf16.gmra.mxu0 %v469
        %v691 = vpop.f32.mrf.mxu0
        %v692 = vadd.f32 %v678, %v691
        %v693 = vpop.f32.mrf.mxu0
        %v694 = vadd.f32 %v680, %v693
        %695 = vdwg.mxu0
        %696 = vmatpush.bf16.msra.mxu0 %v627
        %697 = vmatpush.bf16.msra.mxu0 %v626
        %698 = vmatpush.bf16.msra.mxu0 %v625
        %699 = vmatpush.bf16.msra.mxu0 %v624
        %700 = vmatpush.bf16.msra.mxu0 %v623
        %701 = vmatpush.bf16.msra.mxu0 %v622
        %702 = vmatpush.bf16.msra.mxu0 %v621
        %703 = vmatpush.bf16.msra.mxu0 %v620
        %704 = vmatmul.bf16.gmra.mxu0 %v470
        %v705 = vpop.f32.mrf.mxu0
        %v706 = vadd.f32 %v692, %v705
        %v707 = vpop.f32.mrf.mxu0
        %v708 = vadd.f32 %v694, %v707
        %709 = vdwg.mxu0
        %710 = vmatpush.bf16.msra.mxu0 %v635
        %711 = vmatpush.bf16.msra.mxu0 %v634
        %712 = vmatpush.bf16.msra.mxu0 %v633
        %713 = vmatpush.bf16.msra.mxu0 %v632
        %714 = vmatpush.bf16.msra.mxu0 %v631
        %715 = vmatpush.bf16.msra.mxu0 %v630
        %716 = vmatpush.bf16.msra.mxu0 %v629
        %717 = vmatpush.bf16.msra.mxu0 %v628
        %718 = vmatmul.bf16.gmra.mxu0 %v471
        %v719 = vpop.f32.mrf.mxu0
        %v720 = vadd.f32 %v706, %v719
        %v721 = vpop.f32.mrf.mxu0
        %v722 = vadd.f32 %v708, %v721
        %723 = vdwg.mxu0
        %v724 = vmax.f32 %v720, 0.0
        %v725 = vmax.f32 %v722, 0.0
        %v726 = vpack.c.bf16 %v725, %v724
        %v727 = vld [vmem:[%s3] sm:$0xf]
        %v728 = vld [vmem:[%s3 + $0x4] sm:$0xf]
        %v729 = vld [vmem:[%s3 + $0x8] sm:$0xf]
        %v730 = vld [vmem:[%s3 + $0xc] sm:$0xf]
        %v731 = vld [vmem:[%s3 + $0x10] sm:$0xf]
        %v732 = vld [vmem:[%s3 + $0x14] sm:$0xf]
        %v733 = vld [vmem:[%s3 + $0x18] sm:$0xf]
        %v734 = vld [vmem:[%s3 + $0x1c] sm:$0xf]
        %v735 = vld [vmem:[%s3 + $0x20] sm:$0xf]
        %v736 = vld [vmem:[%s3 + $0x24] sm:$0xf]
        %v737 = vld [vmem:[%s3 + $0x28] sm:$0xf]
        %v738 = vld [vmem:[%s3 + $0x2c] sm:$0xf]
        %v739 = vld [vmem:[%s3 + $0x30] sm:$0xf]
        %v740 = vld [vmem:[%s3 + $0x34] sm:$0xf]
        %v741 = vld [vmem:[%s3 + $0x38] sm:$0xf]
        %v742 = vld [vmem:[%s3 + $0x3c] sm:$0xf]
        %v743 = vld [vmem:[%s4] sm:$0x1]
        %v745 = vperm.slane %v743, 0
        %v763 = vunpack.c.l.b16 %v727
        %v764 = vunpack.c.l.b16 %v728
        %v765 = vunpack.c.l.b16 %v729
        %v766 = vunpack.c.l.b16 %v730
        %v767 = vunpack.c.l.b16 %v731
        %v768 = vunpack.c.l.b16 %v732
        %v769 = vunpack.c.l.b16 %v733
        %v770 = vunpack.c.l.b16 %v734
        %v771 = vunpack.c.l.b16 %v735
        %v772 = vunpack.c.l.b16 %v736
        %v773 = vunpack.c.l.b16 %v737
        %v774 = vunpack.c.l.b16 %v738
        %v775 = vunpack.c.l.b16 %v739
        %v776 = vunpack.c.l.b16 %v740
        %v777 = vunpack.c.l.b16 %v741
        %v778 = vunpack.c.l.b16 %v742
        %v779 = vpack.c.b16 %v764, %v763
        %v780 = vpack.c.b16 %v766, %v765
        %v781 = vpack.c.b16 %v768, %v767
        %v782 = vpack.c.b16 %v770, %v769
        %v783 = vpack.c.b16 %v772, %v771
        %v784 = vpack.c.b16 %v774, %v773
        %v785 = vpack.c.b16 %v776, %v775
        %v786 = vpack.c.b16 %v778, %v777
        %795 = vmatpush.bf16.msra.mxu0 %v786
        %796 = vmatpush.bf16.msra.mxu0 %v785
        %797 = vmatpush.bf16.msra.mxu0 %v784
        %798 = vmatpush.bf16.msra.mxu0 %v783
        %799 = vmatpush.bf16.msra.mxu0 %v782
        %800 = vmatpush.bf16.msra.mxu0 %v781
        %801 = vmatpush.bf16.msra.mxu0 %v780
        %802 = vmatpush.bf16.msra.mxu0 %v779
        %803 = vmatmul.bf16.gmra.mxu0 %v726
        %v804 = vpop.f32.mrf.mxu0
        %v805 = vadd.f32 %v745, %v804
        %v806 = vpop.f32.mrf.mxu0
        %v807 = vadd.f32 %v745, %v806
        %808 = vdwg.mxu0
        %v809 = vmax.f32 %v805, 0.0
        %v810 = vmax.f32 %v807, 0.0
        %v811 = vld [vmem:[%s5] sm:$0xff]
        %v812 = vld [vmem:[%s5 + $0x8] sm:$0xff]
        %v813 = vld [vmem:[%s5 + $0x10] sm:$0xff]
        %v814 = vld [vmem:[%s5 + $0x18] sm:$0xff]
        %v815 = vld [vmem:[%s6] sm:$0x1]
        %v817 = vperm.slane %v815, 0
        %vm819 = vcmask 261120
        %v821 = vsel %vm819, %v809, 0
        %v824 = vsel %vm819, %v810, 0
        %826 = vmatpush.msra.mxu0 0.0
        %827 = vmatpush.msra.mxu0 0.0
        %828 = vmatpush.msra.mxu0 0.0
        %829 = vmatpush.msra.mxu0 0.0
        %830 = vmatpush.msra.mxu0 0.0
        %831 = vmatpush.msra.mxu0 0.0
        %832 = vmatpush.msra.mxu0 0.0
        %833 = vmatpush.msra.mxu0 0.0
        %834 = vmatpush.msra.mxu0 0.0
        %835 = vmatpush.msra.mxu0 0.0
        %836 = vmatpush.msra.mxu0 0.0
        %837 = vmatpush.msra.mxu0 0.0
        %838 = vmatpush.msra.mxu0 %v814
        %839 = vmatpush.msra.mxu0 %v813
        %840 = vmatpush.msra.mxu0 %v812
        %841 = vmatpush.msra.mxu0 %v811
        %842 = vmatmul.f32.gmra.mxu0 %v821
        %v843 = vpop.f32.mrf.mxu0
        %v844 = vadd.f32 %v817, %v843
        %845 = vmatmul.f32.gmra.mxu0 %v824
        %v846 = vpop.f32.mrf.mxu0
        %v847 = vadd.f32 %v817, %v846
        %848 = vdwg.mxu0
        %v849 = vld [vmem:[%s7] sm:$0xff]
        %v850 = vld [vmem:[%s7 + $0x8] sm:$0xff]
        %v851 = vld [vmem:[%s7 + $0x10] sm:$0xff]
        %v852 = vld [vmem:[%s7 + $0x18] sm:$0xff]
        %v853 = vld [vmem:[%s8] sm:$0x1]
        %v855 = vperm.slane %v853, 0
        %857 = vmatpush.msra.mxu0 0.0
        %858 = vmatpush.msra.mxu0 0.0
        %859 = vmatpush.msra.mxu0 0.0
        %860 = vmatpush.msra.mxu0 0.0
        %861 = vmatpush.msra.mxu0 0.0
        %862 = vmatpush.msra.mxu0 0.0
        %863 = vmatpush.msra.mxu0 0.0
        %864 = vmatpush.msra.mxu0 0.0
        %865 = vmatpush.msra.mxu0 0.0
        %866 = vmatpush.msra.mxu0 0.0
        %867 = vmatpush.msra.mxu0 0.0
        %868 = vmatpush.msra.mxu0 0.0
        %869 = vmatpush.msra.mxu0 %v852
        %870 = vmatpush.msra.mxu0 %v851
        %871 = vmatpush.msra.mxu0 %v850
        %872 = vmatpush.msra.mxu0 %v849
        %873 = vmatmul.f32.gmra.mxu0 %v821
        %v874 = vpop.f32.mrf.mxu0
        %v875 = vadd.f32 %v855, %v874
        %876 = vmatmul.f32.gmra.mxu0 %v824
        %v877 = vpop.f32.mrf.mxu0
        %v878 = vadd.f32 %v855, %v877
        %879 = vdwg.mxu0
        %s880 = sld [smem:[#allocation2]]
        %v881 = vmul.f32 %v844, %v844
        %v882 = vmul.f32 %v847, %v847
        %vm883 = vcmask 15360
        %v884 = vsel %vm883, %v881, 0.0
        %885 = vadd.xlane.f32.xlu0 %v884
        %v886 = vpop.xlane.xlu0 %885
        %v887 = vsel %vm883, %v882, 0.0
        %888 = vadd.xlane.f32.xlu0 %v887
        %v889 = vpop.xlane.xlu0 %888
        %v890 = vrsqrt.pop %v886
        %v891 = vmul.f32 %v890, %v886
        %v892 = vmul.f32 %v891, %v890
        %v893 = vmul.f32 0.5, %v892
        %v894 = vsub.f32 1.5, %v893
        %v895 = vmul.f32 %v890, %v894
        %vm896 = vweird.f32 %v886
        %vm897 = vweird.f32 %v890
        %vm898 = vmor %vm896, %vm897
        %v899 = vsel %vm898, %v890, %v895
        %v900 = vrsqrt.pop %v889
        %v901 = vmul.f32 %v900, %v889
        %v902 = vmul.f32 %v901, %v900
        %v903 = vmul.f32 0.5, %v902
        %v904 = vsub.f32 1.5, %v903
        %v905 = vmul.f32 %v900, %v904
        %vm906 = vweird.f32 %v889
        %vm907 = vweird.f32 %v900
        %vm908 = vmor %vm906, %vm907
        %v909 = vsel %vm908, %v900, %v905
        %v910 = vmul.f32 %v886, %v899
        %v911 = vmul.f32 %v889, %v909
        %v912 = vstv %s880
        %v913 = vmul.f32 %v912, %v899
        %v914 = vmul.f32 %v912, %v909
        %v915 = vadd.f32 %v913, 1.0
        %v916 = vadd.f32 %v914, 1.0
        %v917 = vand.u32 2147483647, %v915
        %v918 = vand.u32 2147483647, %v916
        %v919 = vmul.f32 %v917, %v910
        %v920 = vmul.f32 %v918, %v911
        %v921 = vmax.f32 %v919, 1e-06
        %v922 = vmax.f32 %v920, 1e-06
        %v923 = vmul.f32 %v875, %v915
        %v924 = vmul.f32 %v878, %v916
        %v925 = vrcp.pop %v921
        %v926 = vrcp.pop %v922
        %v927 = vmul.f32 %v923, %v925
        %v928 = vmul.f32 %v924, %v926
        %vm929 = vcmask 31744
        %930 = vst.msk [vmem:[%s382] sm:$0xff] %vm929, %v927
        %931 = vst.msk [vmem:[%s382 + $0x8] sm:$0xff] %vm929, %v928
        %s932 = smul.u32 2, %s23
        %p933 = scmp.lt.s32.totalorder %s932, 7
        %s934 = scalar_select %p933, %s932, 7
        %s935 = smul.addr %s934, 8
        %s936 = scalar_lea.vmem %s10, %s935
        // Predicated region
        $region65: #{tpu_custom_call.1} parent=59 // pred_check
          %p937 = pneg %p256
        $region66: #{tpu_custom_call.1} parent=59 // pred_check_branch
          %939 = sbr.rel (%p937) target = $region68
        $region67: #{tpu_custom_call.1} parent=59 // pred_region
          %s940 = smul.u32 2, %s23
        $region68: #{tpu_custom_call.1} parent=59 // pred_fallthru
          _
      $region60: #{tpu_custom_call.1} parent=5 // pred_fallthru
        _
      %p941 = scmp.le.s32.totalorder 2, %s18
      // Predicated region
      $region69: #{tpu_custom_call.1} parent=5 // pred_check
        %p942 = pneg %p941
      $region70: #{tpu_custom_call.1} parent=5 // pred_check_branch
        %944 = sbr.rel (%p942) target = $region72
      $region71: #{tpu_custom_call.1} parent=5 // pred_region
        %s945 = ssub.s32 %s18, 2
        // Predicated region
        $region73: #{tpu_custom_call.1} parent=71 // pred_check
          %p946 = pneg %p262
        $region74: #{tpu_custom_call.1} parent=71 // pred_check_branch
          %948 = sbr.rel (%p946) target = $region76
        $region75: #{tpu_custom_call.1} parent=71 // pred_region
          %s949 = smul.u32 2, %s24
          %p950 = scmp.lt.s32.totalorder %s949, 7
          %s951 = scalar_select %p950, %s949, 7
          %s952 = smul.addr %s951, 8
          %s953 = scalar_lea.vmem %s10, %s952
        $region76: #{tpu_custom_call.1} parent=71 // pred_fallthru
          _
      $region72: #{tpu_custom_call.1} parent=5 // pred_fallthru
        _
    $region6: #{tpu_custom_call.1} parent=1 // loop_footer
      %s22 = sadd.s32 1, %s18
    $region7: #{tpu_custom_call.1} parent=1 // loop_footer_branch
      %17 = sbr.rel target = $region3
    $region8: #{tpu_custom_call.1} parent=1 // loop_exit
      _
    %954 = vsyncpa [#allocation4], 1
    %s955 = scalar_lea.sflag [#allocation4], 1
    %956 = vsyncpa %s955, 1

</llo_original>
